<compile_context>
chip_gen: v6e
topology: v6e:2x2x1
jax: 0.10.0
libtpu: 0.0.40
codegen_flags: <defaults>
</compile_context>

<pallas_src>
import functools

import jax
import jax.numpy as jnp
from jax import lax
from jax.experimental import pallas as pl
from jax.experimental.pallas import tpu as pltpu


def _conv3x3_relu_kernel(x_ref, w_ref, b_ref, o_ref, xpad_ref, patch_ref, *,
                         H, W, pad):
    # x_ref:     (1, Cin, H*W)       one image, spatial on lanes (lane-dense)
    # w_ref:     (Cout, 9*Cin)       im2col weights, (kh, kw, ci) order
    # b_ref:     (Cout, 1)           bias
    # o_ref:     (1, Cout, H*W)      lane-dense output
    # xpad_ref:  (Cin, H*W + 2*pad)  zero-padded flat input (VMEM scratch)
    # patch_ref: (9*Cin, H*W)        im2col matrix (VMEM scratch)
    Cin = x_ref.shape[1]
    HW = H * W

    # In-kernel 'same' padding along the flattened spatial axis: zero margins,
    # copy the image into the (lane-aligned) middle.  This handles the
    # h-boundary; the w-boundary is handled with column masks below.
    zeros_margin = jnp.zeros((Cin, pad), dtype=jnp.float32)
    xpad_ref[:, 0:pad] = zeros_margin
    xpad_ref[:, pad + HW:2 * pad + HW] = zeros_margin
    xpad_ref[:, pad:pad + HW] = x_ref[0].astype(jnp.float32)

    # Column masks for the w-boundary (broadcast over channel sublanes).
    col = lax.broadcasted_iota(jnp.int32, (1, HW), 1) % W
    left_ok = col >= 1           # valid when dw == -1
    right_ok = col <= W - 2      # valid when dw == +1

    # Build the (9*Cin, H*W) im2col matrix: 9 statically shifted, masked copies.
    k = 0
    for dh in (-1, 0, 1):
        for dw in (-1, 0, 1):
            off = dh * W + dw
            shifted = xpad_ref[:, pad + off:pad + off + HW]      # (Cin, H*W)
            if dw == -1:
                shifted = jnp.where(left_ok, shifted, 0.0)
            elif dw == 1:
                shifted = jnp.where(right_ok, shifted, 0.0)
            patch_ref[k * Cin:(k + 1) * Cin, :] = shifted
            k += 1

    # Single lane-dense MXU matmul, bias folded, fused ReLU.
    acc = jnp.dot(w_ref[...], patch_ref[...],
                  preferred_element_type=jnp.float32)            # (Cout, H*W)
    acc = acc + b_ref[...]
    o_ref[0] = jnp.maximum(acc, 0.0).astype(o_ref.dtype)


@jax.jit
def simple_conv_forward(x_nchw, w_oihw, bias):
    """Conv2d(Cin -> Cout, 3x3, padding='same') + ReLU.

    x_nchw: (N, Cin, H, W); w_oihw: (Cout, Cin, 3, 3) (PyTorch layout);
    bias: (Cout,).  Returns (N, Cout, H, W).
    """
    N, Cin, H, W = x_nchw.shape
    Cout, _, KH, KW = w_oihw.shape
    HW = H * W
    # Margin >= max shift (W + 1), rounded up to 128 so the interior copy is
    # lane-aligned.
    pad = ((W + 1 + 127) // 128) * 128

    # Free reshape (contiguous memory): spatial onto the lane axis.
    x_flat = x_nchw.reshape(N, Cin, HW)
    # One-time tiny weight repack to im2col order (kh, kw, ci).
    w2d = jnp.transpose(w_oihw, (0, 2, 3, 1)).reshape(Cout, KH * KW * Cin)
    b2d = bias.reshape(Cout, 1)

    kernel = functools.partial(_conv3x3_relu_kernel, H=H, W=W, pad=pad)

    out_flat = pl.pallas_call(
        kernel,
        out_shape=jax.ShapeDtypeStruct((N, Cout, HW), x_nchw.dtype),
        grid_spec=pltpu.PrefetchScalarGridSpec(
            num_scalar_prefetch=0,
            grid=(N,),
            in_specs=[
                pl.BlockSpec((1, Cin, HW), lambda n: (n, 0, 0)),
                pl.BlockSpec((Cout, KH * KW * Cin), lambda n: (0, 0)),
                pl.BlockSpec((Cout, 1), lambda n: (0, 0)),
            ],
            out_specs=pl.BlockSpec((1, Cout, HW), lambda n: (n, 0, 0)),
            scratch_shapes=[
                pltpu.VMEM((Cin, HW + 2 * pad), jnp.float32),
                pltpu.VMEM((KH * KW * Cin, HW), jnp.float32),
            ],
        ),
        compiler_params=pltpu.CompilerParams(
            dimension_semantics=("parallel",)),
    )(x_flat, w2d, b2d)

    return out_flat.reshape(N, Cout, H, W)


if __name__ == "__main__":
    key = jax.random.PRNGKey(0)
    kx, kw_key, kb = jax.random.split(key, 3)

    N, Cin, H, W = 2, 4, 16, 16
    Cout, K = 6, 3

    x = jax.random.normal(kx, (N, Cin, H, W), dtype=jnp.float32)
    # Deterministic init mimicking nn.Conv2d default (uniform +/- 1/sqrt(fan_in)).
    fan_in = Cin * K * K
    bound = 1.0 / (fan_in ** 0.5)
    w = jax.random.uniform(kw_key, (Cout, Cin, K, K), dtype=jnp.float32,
                           minval=-bound, maxval=bound)
    b = jax.random.uniform(kb, (Cout,), dtype=jnp.float32,
                           minval=-bound, maxval=bound)

    out = simple_conv_forward(x, w, b)
    jax.block_until_ready(out)
    assert out.shape == (N, Cout, H, W)

    # Sanity check vs XLA's conv (same semantics as nn.Conv2d + ReLU).
    # Loose tolerance: TPU default matmul/conv precision may use bf16 passes.
    ref = lax.conv_general_dilated(
        x, w, window_strides=(1, 1), padding="SAME",
        dimension_numbers=("NCHW", "OIHW", "NCHW"))
    ref = jnp.maximum(ref + b.reshape(1, Cout, 1, 1), 0.0)
    assert jnp.allclose(out, ref, atol=2e-2, rtol=2e-2), (
        "kernel output mismatch vs reference conv")

    print("KERNEL_OK")
</pallas_src>

<mosaic_0001>
module attributes {stable_mosaic.version = 11 : i64} {
  func.func @_conv3x3_relu_kernel(%arg0: i32, %arg1: memref<1x4x256xf32, #tpu.memory_space<vmem>>, %arg2: memref<6x36xf32, #tpu.memory_space<vmem>>, %arg3: memref<6x1xf32, #tpu.memory_space<vmem>>, %arg4: memref<1x6x256xf32, #tpu.memory_space<vmem>>, %arg5: memref<4x512xf32, #tpu.memory_space<vmem>>, %arg6: memref<36x256xf32, #tpu.memory_space<vmem>>) attributes {dimension_semantics = [#tpu.dimension_semantics<parallel>], iteration_bounds = array<i64: 2>, scalar_prefetch = 0 : i64, scratch_operands = 2 : i64, tpu.core_type = #tpu.core_type<tc>, window_params = [{transform_indices = @transform_0, window_bounds = array<i64: 1, 4, 256>}, {pipeline_mode = #tpu.pipeline_mode<synchronous>, transform_indices = @transform_1, window_bounds = array<i64: 6, 36>}, {pipeline_mode = #tpu.pipeline_mode<synchronous>, transform_indices = @transform_2, window_bounds = array<i64: 6, 1>}, {transform_indices = @transform_3, window_bounds = array<i64: 1, 6, 256>}]} {
    %cst = arith.constant 0.000000e+00 : f32
    %0 = vector.broadcast %cst : f32 to vector<4x128xf32>
    %c0 = arith.constant 0 : index
    %c0_0 = arith.constant 0 : index
    %1 = vector.load %arg5[%c0, %c0_0] : memref<4x512xf32, #tpu.memory_space<vmem>>, vector<4x128xf32>
    tpu.vector_store %arg5[%c0, %c0_0], %0 {strides = array<i32>} : memref<4x512xf32, #tpu.memory_space<vmem>>, vector<4x128xf32>,
    %c0_1 = arith.constant 0 : index
    %c384 = arith.constant 384 : index
    %2 = vector.load %arg5[%c0_1, %c384] : memref<4x512xf32, #tpu.memory_space<vmem>>, vector<4x128xf32>
    tpu.vector_store %arg5[%c0_1, %c384], %0 {strides = array<i32>} : memref<4x512xf32, #tpu.memory_space<vmem>>, vector<4x128xf32>,
    %c0_2 = arith.constant 0 : index
    %c0_3 = arith.constant 0 : index
    %c0_4 = arith.constant 0 : index
    %3 = vector.load %arg1[%c0_2, %c0_3, %c0_4] : memref<1x4x256xf32, #tpu.memory_space<vmem>>, vector<1x4x256xf32>
    %4 = vector.shape_cast %3 : vector<1x4x256xf32> to vector<4x256xf32>
    %c0_5 = arith.constant 0 : index
    %c128 = arith.constant 128 : index
    %5 = vector.load %arg5[%c0_5, %c128] : memref<4x512xf32, #tpu.memory_space<vmem>>, vector<4x256xf32>
    tpu.vector_store %arg5[%c0_5, %c128], %4 {strides = array<i32>} : memref<4x512xf32, #tpu.memory_space<vmem>>, vector<4x256xf32>,
    %6 = tpu.iota {dimensions = array<i32: 1>} : vector<1x256xi32>
    %c16_i32 = arith.constant 16 : i32
    %c0_i32 = arith.constant 0 : i32
    %7 = arith.cmpi eq, %c16_i32, %c0_i32 : i32
    %c1_i32 = arith.constant 1 : i32
    %8 = arith.select %7, %c1_i32, %c16_i32 : i32
    %9 = vector.broadcast %8 : i32 to vector<1x256xi32>
    %10 = arith.remsi %6, %9 : vector<1x256xi32>
    %c0_i32_6 = arith.constant 0 : i32
    %11 = vector.broadcast %c0_i32_6 : i32 to vector<1x256xi32>
    %12 = arith.cmpi ne, %10, %11 : vector<1x256xi32>
    %c0_i32_7 = arith.constant 0 : i32
    %13 = vector.broadcast %c0_i32_7 : i32 to vector<1x256xi32>
    %14 = arith.cmpi slt, %10, %13 : vector<1x256xi32>
    %c0_i32_8 = arith.constant 0 : i32
    %15 = arith.cmpi slt, %8, %c0_i32_8 : i32
    %16 = vector.broadcast %15 : i1 to vector<1x256xi1>
    %17 = vector.broadcast %16 : vector<1x256xi1> to vector<1x256xi1>
    %18 = arith.xori %14, %17 : vector<1x256xi1>
    %19 = arith.andi %18, %12 : vector<1x256xi1>
    %20 = vector.broadcast %8 : i32 to vector<1x256xi32>
    %21 = arith.addi %10, %20 : vector<1x256xi32>
    %22 = arith.select %19, %21, %10 : vector<1x256xi1>, vector<1x256xi32>
    %c1_i32_9 = arith.constant 1 : i32
    %23 = vector.broadcast %c1_i32_9 : i32 to vector<1x256xi32>
    %24 = arith.cmpi sge, %22, %23 : vector<1x256xi32>
    %c14_i32 = arith.constant 14 : i32
    %25 = vector.broadcast %c14_i32 : i32 to vector<1x256xi32>
    %26 = arith.cmpi sle, %22, %25 : vector<1x256xi32>
    %c0_10 = arith.constant 0 : index
    %c111 = arith.constant 111 : index
    %27 = vector.load %arg5[%c0_10, %c111] : memref<4x512xf32, #tpu.memory_space<vmem>>, vector<4x256xf32>
    %cst_11 = arith.constant 0.000000e+00 : f32
    %28 = vector.shape_cast %24 : vector<1x256xi1> to vector<1x256xi1>
    %29 = vector.broadcast %28 : vector<1x256xi1> to vector<4x256xi1>
    %30 = vector.broadcast %cst_11 : f32 to vector<4x256xf32>
    %31 = arith.select %29, %27, %30 : vector<4x256xi1>, vector<4x256xf32>
    %c0_12 = arith.constant 0 : index
    %c0_13 = arith.constant 0 : index
    %32 = vector.load %arg6[%c0_12, %c0_13] : memref<36x256xf32, #tpu.memory_space<vmem>>, vector<4x256xf32>
    tpu.vector_store %arg6[%c0_12, %c0_13], %31 {strides = array<i32>} : memref<36x256xf32, #tpu.memory_space<vmem>>, vector<4x256xf32>,
    %c0_14 = arith.constant 0 : index
    %c112 = arith.constant 112 : index
    %33 = vector.load %arg5[%c0_14, %c112] : memref<4x512xf32, #tpu.memory_space<vmem>>, vector<4x256xf32>
    %c4 = arith.constant 4 : index
    %c0_15 = arith.constant 0 : index
    %34 = vector.load %arg6[%c4, %c0_15] : memref<36x256xf32, #tpu.memory_space<vmem>>, vector<4x256xf32>
    tpu.vector_store %arg6[%c4, %c0_15], %33 {strides = array<i32>} : memref<36x256xf32, #tpu.memory_space<vmem>>, vector<4x256xf32>,
    %c0_16 = arith.constant 0 : index
    %c113 = arith.constant 113 : index
    %35 = vector.load %arg5[%c0_16, %c113] : memref<4x512xf32, #tpu.memory_space<vmem>>, vector<4x256xf32>
    %cst_17 = arith.constant 0.000000e+00 : f32
    %36 = vector.shape_cast %26 : vector<1x256xi1> to vector<1x256xi1>
    %37 = vector.broadcast %36 : vector<1x256xi1> to vector<4x256xi1>
    %38 = vector.broadcast %cst_17 : f32 to vector<4x256xf32>
    %39 = arith.select %37, %35, %38 : vector<4x256xi1>, vector<4x256xf32>
    %c8 = arith.constant 8 : index
    %c0_18 = arith.constant 0 : index
    %40 = vector.load %arg6[%c8, %c0_18] : memref<36x256xf32, #tpu.memory_space<vmem>>, vector<4x256xf32>
    tpu.vector_store %arg6[%c8, %c0_18], %39 {strides = array<i32>} : memref<36x256xf32, #tpu.memory_space<vmem>>, vector<4x256xf32>,
    %c0_19 = arith.constant 0 : index
    %c127 = arith.constant 127 : index
    %41 = vector.load %arg5[%c0_19, %c127] : memref<4x512xf32, #tpu.memory_space<vmem>>, vector<4x256xf32>
    %cst_20 = arith.constant 0.000000e+00 : f32
    %42 = vector.shape_cast %24 : vector<1x256xi1> to vector<1x256xi1>
    %43 = vector.broadcast %42 : vector<1x256xi1> to vector<4x256xi1>
    %44 = vector.broadcast %cst_20 : f32 to vector<4x256xf32>
    %45 = arith.select %43, %41, %44 : vector<4x256xi1>, vector<4x256xf32>
    %c12 = arith.constant 12 : index
    %c0_21 = arith.constant 0 : index
    %46 = vector.load %arg6[%c12, %c0_21] : memref<36x256xf32, #tpu.memory_space<vmem>>, vector<4x256xf32>
    tpu.vector_store %arg6[%c12, %c0_21], %45 {strides = array<i32>} : memref<36x256xf32, #tpu.memory_space<vmem>>, vector<4x256xf32>,
    %c0_22 = arith.constant 0 : index
    %c128_23 = arith.constant 128 : index
    %47 = vector.load %arg5[%c0_22, %c128_23] : memref<4x512xf32, #tpu.memory_space<vmem>>, vector<4x256xf32>
    %c16 = arith.constant 16 : index
    %c0_24 = arith.constant 0 : index
    %48 = vector.load %arg6[%c16, %c0_24] : memref<36x256xf32, #tpu.memory_space<vmem>>, vector<4x256xf32>
    tpu.vector_store %arg6[%c16, %c0_24], %47 {strides = array<i32>} : memref<36x256xf32, #tpu.memory_space<vmem>>, vector<4x256xf32>,
    %c0_25 = arith.constant 0 : index
    %c129 = arith.constant 129 : index
    %49 = vector.load %arg5[%c0_25, %c129] : memref<4x512xf32, #tpu.memory_space<vmem>>, vector<4x256xf32>
    %cst_26 = arith.constant 0.000000e+00 : f32
    %50 = vector.shape_cast %26 : vector<1x256xi1> to vector<1x256xi1>
    %51 = vector.broadcast %50 : vector<1x256xi1> to vector<4x256xi1>
    %52 = vector.broadcast %cst_26 : f32 to vector<4x256xf32>
    %53 = arith.select %51, %49, %52 : vector<4x256xi1>, vector<4x256xf32>
    %c20 = arith.constant 20 : index
    %c0_27 = arith.constant 0 : index
    %54 = vector.load %arg6[%c20, %c0_27] : memref<36x256xf32, #tpu.memory_space<vmem>>, vector<4x256xf32>
    tpu.vector_store %arg6[%c20, %c0_27], %53 {strides = array<i32>} : memref<36x256xf32, #tpu.memory_space<vmem>>, vector<4x256xf32>,
    %c0_28 = arith.constant 0 : index
    %c143 = arith.constant 143 : index
    %55 = vector.load %arg5[%c0_28, %c143] : memref<4x512xf32, #tpu.memory_space<vmem>>, vector<4x256xf32>
    %cst_29 = arith.constant 0.000000e+00 : f32
    %56 = vector.shape_cast %24 : vector<1x256xi1> to vector<1x256xi1>
    %57 = vector.broadcast %56 : vector<1x256xi1> to vector<4x256xi1>
    %58 = vector.broadcast %cst_29 : f32 to vector<4x256xf32>
    %59 = arith.select %57, %55, %58 : vector<4x256xi1>, vector<4x256xf32>
    %c24 = arith.constant 24 : index
    %c0_30 = arith.constant 0 : index
    %60 = vector.load %arg6[%c24, %c0_30] : memref<36x256xf32, #tpu.memory_space<vmem>>, vector<4x256xf32>
    tpu.vector_store %arg6[%c24, %c0_30], %59 {strides = array<i32>} : memref<36x256xf32, #tpu.memory_space<vmem>>, vector<4x256xf32>,
    %c0_31 = arith.constant 0 : index
    %c144 = arith.constant 144 : index
    %61 = vector.load %arg5[%c0_31, %c144] : memref<4x512xf32, #tpu.memory_space<vmem>>, vector<4x256xf32>
    %c28 = arith.constant 28 : index
    %c0_32 = arith.constant 0 : index
    %62 = vector.load %arg6[%c28, %c0_32] : memref<36x256xf32, #tpu.memory_space<vmem>>, vector<4x256xf32>
    tpu.vector_store %arg6[%c28, %c0_32], %61 {strides = array<i32>} : memref<36x256xf32, #tpu.memory_space<vmem>>, vector<4x256xf32>,
    %c0_33 = arith.constant 0 : index
    %c145 = arith.constant 145 : index
    %63 = vector.load %arg5[%c0_33, %c145] : memref<4x512xf32, #tpu.memory_space<vmem>>, vector<4x256xf32>
    %cst_34 = arith.constant 0.000000e+00 : f32
    %64 = vector.shape_cast %26 : vector<1x256xi1> to vector<1x256xi1>
    %65 = vector.broadcast %64 : vector<1x256xi1> to vector<4x256xi1>
    %66 = vector.broadcast %cst_34 : f32 to vector<4x256xf32>
    %67 = arith.select %65, %63, %66 : vector<4x256xi1>, vector<4x256xf32>
    %c32 = arith.constant 32 : index
    %c0_35 = arith.constant 0 : index
    %68 = vector.load %arg6[%c32, %c0_35] : memref<36x256xf32, #tpu.memory_space<vmem>>, vector<4x256xf32>
    tpu.vector_store %arg6[%c32, %c0_35], %67 {strides = array<i32>} : memref<36x256xf32, #tpu.memory_space<vmem>>, vector<4x256xf32>,
    %c0_36 = arith.constant 0 : index
    %c0_37 = arith.constant 0 : index
    %69 = vector.load %arg2[%c0_36, %c0_37] : memref<6x36xf32, #tpu.memory_space<vmem>>, vector<6x36xf32>
    %c0_38 = arith.constant 0 : index
    %c0_39 = arith.constant 0 : index
    %70 = vector.load %arg6[%c0_38, %c0_39] : memref<36x256xf32, #tpu.memory_space<vmem>>, vector<36x256xf32>
    %cst_40 = arith.constant dense<0.000000e+00> : vector<6x256xf32>
    %71 = tpu.matmul %69, %70, %cst_40 {dimension_numbers = #tpu.dot_dimension_numbers<[1], [0], [0], [1], [0, 0, 1, 1], [], []>} : vector<6x36xf32>, vector<36x256xf32>, vector<6x256xf32> -> vector<6x256xf32>
    %c0_41 = arith.constant 0 : index
    %c0_42 = arith.constant 0 : index
    %72 = vector.load %arg3[%c0_41, %c0_42] : memref<6x1xf32, #tpu.memory_space<vmem>>, vector<6x1xf32>
    %73 = vector.broadcast %72 : vector<6x1xf32> to vector<6x256xf32>
    %74 = arith.addf %71, %73 : vector<6x256xf32>
    %cst_43 = arith.constant 0.000000e+00 : f32
    %75 = vector.broadcast %cst_43 : f32 to vector<6x256xf32>
    %76 = arith.maximumf %74, %75 : vector<6x256xf32>
    %c0_44 = arith.constant 0 : index
    %c0_45 = arith.constant 0 : index
    %c0_46 = arith.constant 0 : index
    %77 = vector.load %arg4[%c0_44, %c0_45, %c0_46] : memref<1x6x256xf32, #tpu.memory_space<vmem>>, vector<1x6x256xf32>
    %78 = vector.shape_cast %77 : vector<1x6x256xf32> to vector<6x256xf32>
    %79 = vector.shape_cast %76 : vector<6x256xf32> to vector<1x6x256xf32>
    tpu.vector_store %arg4[%c0_44, %c0_45, %c0_46], %79 {strides = array<i32>} : memref<1x6x256xf32, #tpu.memory_space<vmem>>, vector<1x6x256xf32>,
    return
  }
  func.func @transform_0(%arg0: i32) -> (i32, i32, i32) {
    %c0_i32 = arith.constant 0 : i32
    %c0_i32_0 = arith.constant 0 : i32
    %c0_i32_1 = arith.constant 0 : i32
    return %arg0, %c0_i32, %c0_i32_0 : i32, i32, i32
  }
  func.func @transform_1(%arg0: i32) -> (i32, i32) {
    %c0_i32 = arith.constant 0 : i32
    %c0_i32_0 = arith.constant 0 : i32
    %c0_i32_1 = arith.constant 0 : i32
    return %c0_i32, %c0_i32_0 : i32, i32
  }
  func.func @transform_2(%arg0: i32) -> (i32, i32) {
    %c0_i32 = arith.constant 0 : i32
    %c0_i32_0 = arith.constant 0 : i32
    %c0_i32_1 = arith.constant 0 : i32
    return %c0_i32, %c0_i32_0 : i32, i32
  }
  func.func @transform_3(%arg0: i32) -> (i32, i32, i32) {
    %c0_i32 = arith.constant 0 : i32
    %c0_i32_0 = arith.constant 0 : i32
    %c0_i32_1 = arith.constant 0 : i32
    return %arg0, %c0_i32, %c0_i32_0 : i32, i32, i32
  }
}

</mosaic_0001>

<llo_original>
// kernel: simple_conv_forward.1
$region0: #{simple_conv_forward.1}
  #allocation0 [shape = 'u32[]', space=smem, size = 0x4, offset = 0x4, fixed_abs, tag = 'smem constant byte address 0x4 - core index']
  #allocation1 [shape = 'u32[144,128]{1,0:T(1,128)}', space=vmem, size = 0x12000, scoped, tag = 'internal scratch']
  #allocation2 [shape = 'f32[4,512]{1,0:T(4,128)}', space=vmem, size = 0x2000, scoped, tag = 'scratch operand']
  #allocation3 [shape = 'f32[36,256]{1,0:T(8,128)}', space=vmem, size = 0xa000, scoped, tag = 'scratch operand']
  %s0 = inlined_call_operand.vmem [shape: f32[2,4,256], index: 0, kind: input, shape index: {}]
  %s1 = inlined_call_operand.vmem [shape: f32[6,36], index: 1, kind: input, shape index: {}]
  %s2 = inlined_call_operand.vmem [shape: f32[6,1], index: 2, kind: input, shape index: {}]
  %s3 = inlined_call_operand.vmem [shape: f32[2,6,256], index: 3, kind: output, shape index: {}]
  %s4 = sld [smem:[#allocation0]]
  $region45: #{simple_conv_forward.1} parent=0
    _
  %s6 = ssub.s32 1, %s4
  %s7 = scalar_select 0, %s6, %s4
  loop: start=0, step=1, limit=4
  $region2: #{simple_conv_forward.1} parent=0 // loop_pre_header
    _
  $region3: #{simple_conv_forward.1} parent=0 // loop_header
    %s9 = sphi 0, %s13
    %p10 = scmp.ge.s32.totalorder %s9, 4
    %s19 = sphi 0, %s21
    %s22 = sphi 0, %s19
    %s23 = sphi 0, %s22
    %s39 = sphi 0, %s23
    %s43 = sphi 0, %s43
    %s45 = sphi 0, %s43
    %s46 = sphi 0, %s45
    %s60 = sphi 0, %s46
    %s64 = sphi 0, %s64
    %s66 = sphi 0, %s64
    %s67 = sphi 0, %s66
    %s81 = sphi 0, %s67
    %s87 = sphi 0, %s89
    %s90 = sphi 0, %s87
    %s91 = sphi 0, %s90
    %s107 = sphi 0, %s91
  $region4: #{simple_conv_forward.1} parent=0 // loop_header_branch
    %12 = sbr.rel (%p10) target = $region8
  $region5: #{simple_conv_forward.1} parent=0 // loop_body
    %s14 = ssub.s32 %s9, 1
    %s15 = ssub.s32 %s9, 2
    %s16 = sadd.s32 %s9, 1
    %s17 = ssub.s32 %s9, %s16
    %p18 = scmp.eq.s32.totalorder %s17, 0
    %s20 = sadd.s32 %s19, 1
    %s21 = scalar_select %p18, %s19, %s20
    %p24 = pneg %p18
    %p25 = scmp.eq.s32.totalorder %s9, 1
    %p26 = por %p24, %p25
    %p27 = scmp.ne.s32.totalorder %s19, %s22
    %p28 = scmp.eq.s32.totalorder %s9, 0
    %p29 = por %p27, %p28
    %p30 = scmp.ne.s32.totalorder %s19, %s22
    %p31 = scmp.eq.s32.totalorder %s14, 1
    %p32 = por %p30, %p31
    %p33 = scmp.ne.s32.totalorder %s22, %s23
    %p34 = scmp.eq.s32.totalorder %s14, 0
    %p35 = por %p33, %p34
    %p36 = scmp.ne.s32.totalorder %s22, %s23
    %p37 = scmp.eq.s32.totalorder %s15, 1
    %p38 = por %p36, %p37
    %p40 = scmp.ne.s32.totalorder %s23, %s39
    %p41 = scmp.eq.s32.totalorder %s15, 0
    %p42 = por %p40, %p41
    %s44 = sadd.s32 %s43, 1
    %p47 = scmp.eq.s32.totalorder %s9, 1
    %p48 = scmp.ne.s32.totalorder %s43, %s45
    %p49 = scmp.eq.s32.totalorder %s9, 0
    %p50 = por %p48, %p49
    %p51 = scmp.ne.s32.totalorder %s43, %s45
    %p52 = scmp.eq.s32.totalorder %s14, 1
    %p53 = por %p51, %p52
    %p54 = scmp.ne.s32.totalorder %s45, %s46
    %p55 = scmp.eq.s32.totalorder %s14, 0
    %p56 = por %p54, %p55
    %p57 = scmp.ne.s32.totalorder %s45, %s46
    %p58 = scmp.eq.s32.totalorder %s15, 1
    %p59 = por %p57, %p58
    %p61 = scmp.ne.s32.totalorder %s46, %s60
    %p62 = scmp.eq.s32.totalorder %s15, 0
    %p63 = por %p61, %p62
    %s65 = sadd.s32 %s64, 1
    %p68 = scmp.eq.s32.totalorder %s9, 1
    %p69 = scmp.ne.s32.totalorder %s64, %s66
    %p70 = scmp.eq.s32.totalorder %s9, 0
    %p71 = por %p69, %p70
    %p72 = scmp.ne.s32.totalorder %s64, %s66
    %p73 = scmp.eq.s32.totalorder %s14, 1
    %p74 = por %p72, %p73
    %p75 = scmp.ne.s32.totalorder %s66, %s67
    %p76 = scmp.eq.s32.totalorder %s14, 0
    %p77 = por %p75, %p76
    %p78 = scmp.ne.s32.totalorder %s66, %s67
    %p79 = scmp.eq.s32.totalorder %s15, 1
    %p80 = por %p78, %p79
    %p82 = scmp.ne.s32.totalorder %s67, %s81
    %p83 = scmp.eq.s32.totalorder %s15, 0
    %p84 = por %p82, %p83
    %s85 = ssub.s32 %s9, %s16
    %p86 = scmp.eq.s32.totalorder %s85, 0
    %s88 = sadd.s32 %s87, 1
    %s89 = scalar_select %p86, %s87, %s88
    %p92 = pneg %p86
    %p93 = scmp.eq.s32.totalorder %s9, 1
    %p94 = por %p92, %p93
    %p95 = scmp.ne.s32.totalorder %s87, %s90
    %p96 = scmp.eq.s32.totalorder %s9, 0
    %p97 = por %p95, %p96
    %p98 = scmp.ne.s32.totalorder %s87, %s90
    %p99 = scmp.eq.s32.totalorder %s14, 1
    %p100 = por %p98, %p99
    %p101 = scmp.ne.s32.totalorder %s90, %s91
    %p102 = scmp.eq.s32.totalorder %s14, 0
    %p103 = por %p101, %p102
    %p104 = scmp.ne.s32.totalorder %s90, %s91
    %p105 = scmp.eq.s32.totalorder %s15, 1
    %p106 = por %p104, %p105
    %p108 = scmp.ne.s32.totalorder %s91, %s107
    %p109 = scmp.eq.s32.totalorder %s15, 0
    %p110 = por %p108, %p109
    %p111 = scmp.le.s32.totalorder 1, %s9
    %p112 = scmp.lt.s32.totalorder %s9, 3
    %p113 = pnand %p111, %p112
    %p114 = pneg %p113
    // Predicated region
    $region9: #{simple_conv_forward.1} parent=5 // pred_check
      _
    $region10: #{simple_conv_forward.1} parent=5 // pred_check_branch
      %116 = sbr.rel (%p113) target = $region12
    $region11: #{simple_conv_forward.1} parent=5 // pred_region
      %s117 = ssub.s32 %s9, 1
      // Predicated region
      $region13: #{simple_conv_forward.1} parent=11 // pred_check
        %p118 = pneg %p56
      $region14: #{simple_conv_forward.1} parent=11 // pred_check_branch
        %120 = sbr.rel (%p118) target = $region16
      $region15: #{simple_conv_forward.1} parent=11 // pred_region
        _
      $region16: #{simple_conv_forward.1} parent=11 // pred_fallthru
        _
      // Predicated region
      $region17: #{simple_conv_forward.1} parent=11 // pred_check
        %p121 = pneg %p77
      $region18: #{simple_conv_forward.1} parent=11 // pred_check_branch
        %123 = sbr.rel (%p121) target = $region20
      $region19: #{simple_conv_forward.1} parent=11 // pred_region
        _
      $region20: #{simple_conv_forward.1} parent=11 // pred_fallthru
        _
    $region12: #{simple_conv_forward.1} parent=5 // pred_fallthru
      _
    %p124 = scmp.lt.s32.totalorder %s9, 2
    // Predicated region
    $region21: #{simple_conv_forward.1} parent=5 // pred_check
      %p125 = pneg %p124
    $region22: #{simple_conv_forward.1} parent=5 // pred_check_branch
      %127 = sbr.rel (%p125) target = $region24
    $region23: #{simple_conv_forward.1} parent=5 // pred_region
      // Predicated region
      $region25: #{simple_conv_forward.1} parent=23 // pred_check
        %p128 = pneg %p29
      $region26: #{simple_conv_forward.1} parent=23 // pred_check_branch
        %130 = sbr.rel (%p128) target = $region28
      $region27: #{simple_conv_forward.1} parent=23 // pred_region
        %p131 = scmp.lt.s32.totalorder %s9, 1
        %s132 = scalar_select %p131, %s9, 1
        %s133 = smul.addr %s132, 2
        %s134 = smul.addr %s133, 4
        %s135 = scalar_lea.vmem %s0, %s134
      $region28: #{simple_conv_forward.1} parent=23 // pred_fallthru
        _
    $region24: #{simple_conv_forward.1} parent=5 // pred_fallthru
      _
    %p136 = scmp.le.s32.totalorder 1, %s9
    %p137 = scmp.lt.s32.totalorder %s9, 3
    %p138 = pnand %p136, %p137
    %p139 = pneg %p138
    // Predicated region
    $region29: #{simple_conv_forward.1} parent=5 // pred_check
      _
    $region30: #{simple_conv_forward.1} parent=5 // pred_check_branch
      %141 = sbr.rel (%p138) target = $region32
    $region31: #{simple_conv_forward.1} parent=5 // pred_region
      %s142 = ssub.s32 %s9, 1
      %p143 = scmp.lt.s32.totalorder %s14, 1
      %s144 = scalar_select %p143, %s14, 1
      %s145 = smul.addr %s144, 2
      %s146 = smul.addr %s145, 4
      %s147 = scalar_lea.vmem %s0, %s146
      %p148 = pneg %p35
      %p149 = pneg %p32
      %p150 = pneg %p56
      %p151 = pneg %p53
      %p152 = pneg %p77
      %p153 = pneg %p74
      %p154 = pneg %p103
      %p155 = pneg %p100
      %p156 = scmp.lt.s32.totalorder %s14, 1
      %s157 = scalar_select %p156, %s14, 1
      %s158 = smul.addr %s157, 2
      %s159 = smul.addr %s158, 8
      %s160 = scalar_lea.vmem %s3, %s159
      %p161 = scmp.lt.s32.totalorder %s14, 1
      %s162 = scalar_select %p161, %s14, 1
      %s163 = smul.addr %s162, 2
      %s164 = smul.addr %s163, 4
      %s165 = scalar_lea.vmem %s0, %s164
      %p166 = scmp.lt.s32.totalorder %s14, 1
      %s167 = scalar_select %p166, %s14, 1
      %s168 = smul.addr %s167, 2
      %s169 = smul.addr %s168, 8
      %s170 = scalar_lea.vmem %s3, %s169
      %171 = vst [vmem:[#allocation2] sm:$0xf] 0.0
      %172 = vst [vmem:[#allocation2 + $0xc] sm:$0xf] 0.0
      %v173 = vld [vmem:[%s165] sm:$0xff]
      %174 = vst [vmem:[#allocation2 + $0x4] sm:$0xff] %v173
      %v175 = vlaneseq
      %v176 = vand.u32 %v175, 127
      %v177 = vadd.s32 %v176, 128
      %vm178 = vcmp.lt.s32.totalorder %v176, 0
      %v179 = vsub.s32 0, %v176
      %v180 = vsel %vm178, %v179, %v176
      %v181 = vshrl.u32 %v180, 4
      %v182 = vand.u32 %v180, 15
      %v183 = vsub.s32 0, %v182
      %v184 = vsel %vm178, %v183, %v182
      %vm185 = vcmp.lt.s32.totalorder %v177, 0
      %v186 = vsub.s32 0, %v177
      %v187 = vsel %vm185, %v186, %v177
      %v188 = vshrl.u32 %v187, 4
      %v189 = vand.u32 %v187, 15
      %v190 = vsub.s32 0, %v189
      %v191 = vsel %vm185, %v190, %v189
      %vm192 = vcmp.ne.s32.totalorder %v184, 0
      %vm193 = vcmp.ne.s32.totalorder %v191, 0
      %vm194 = vcmp.lt.s32.totalorder %v184, 0
      %vm195 = vcmp.lt.s32.totalorder %v191, 0
      %vm196 = vmand %vm194, %vm192
      %vm197 = vmand %vm195, %vm193
      %v198 = vadd.s32 %v184, 16
      %v199 = vadd.s32 %v191, 16
      %v200 = vsel %vm196, %v198, %v184
      %v201 = vsel %vm197, %v199, %v191
      %vm202 = vcmp.ge.s32.totalorder %v200, 1
      %vm203 = vcmp.ge.s32.totalorder %v201, 1
      %vm204 = vcmp.le.s32.totalorder %v200, 14
      %vm205 = vcmp.le.s32.totalorder %v201, 14
      %v206 = vld [vmem:[#allocation2] sm:$0xff]
      %v207 = vld [vmem:[#allocation2 + $0x8] sm:$0xf]
      %v208 = vsel %vm202, 1, 0
      %v209 = vsel %vm203, 1, 0
      %vm210 = vcmp.eq.s32.totalorder %v208, 1
      %vm211 = vcmp.eq.s32.totalorder %v209, 1
      %v214 = vcombine.high %v206, %v206
      %215 = vrot.lane.b32.xlu0 %v206, 17
      %v216 = vpop.permute.xlu0 %215
      %217 = vrot.lane.b32.xlu0 %v214, 17
      %v218 = vpop.permute.xlu0 %217
      %219 = vrot.lane.b32.xlu0 %v207, 17
      %v220 = vpop.permute.xlu0 %219
      %vm221 = vcmask 138240
      %v222 = vsel %vm221, %v216, %v218
      %v223 = vsel %vm221, %v218, %v220
      %v226 = vsel %vm210, %v222, 0.0
      %v227 = vsel %vm211, %v223, 0.0
      %228 = vst [vmem:[#allocation3] sm:$0xf] %v226
      %229 = vst [vmem:[#allocation3 + $0x8] sm:$0xf] %v227
      %v230 = vld [vmem:[#allocation2] sm:$0xff]
      %v231 = vld [vmem:[#allocation2 + $0x8] sm:$0xf]
      %v234 = vcombine.low %v230, %v230
      %v235 = vcombine.low %v231, %v231
      %236 = vrot.lane.b32.xlu0 %v234, 16
      %v237 = vpop.permute.xlu0 %236
      %238 = vrot.lane.b32.xlu0 %v230, 16
      %v239 = vpop.permute.xlu0 %238
      %240 = vrot.lane.b32.xlu0 %v235, 16
      %v241 = vpop.permute.xlu0 %240
      %vm242 = vcmask 130048
      %v243 = vsel %vm242, %v237, %v239
      %v244 = vsel %vm242, %v239, %v241
      %247 = vst [vmem:[#allocation3] sm:$0xf0] %v243
      %248 = vst [vmem:[#allocation3 + $0x8] sm:$0xf0] %v244
      %v249 = vld [vmem:[#allocation2] sm:$0xff]
      %v250 = vld [vmem:[#allocation2 + $0x8] sm:$0xf]
      %v251 = vsel %vm204, 1, 0
      %v252 = vsel %vm205, 1, 0
      %vm253 = vcmp.eq.s32.totalorder %v251, 1
      %vm254 = vcmp.eq.s32.totalorder %v252, 1
      %v257 = vcombine.high %v249, %v249
      %258 = vrot.lane.b32.xlu0 %v249, 15
      %v259 = vpop.permute.xlu0 %258
      %260 = vrot.lane.b32.xlu0 %v257, 15
      %v261 = vpop.permute.xlu0 %260
      %262 = vrot.lane.b32.xlu0 %v250, 15
      %v263 = vpop.permute.xlu0 %262
      %vm264 = vcmask 121856
      %v265 = vsel %vm264, %v259, %v261
      %v266 = vsel %vm264, %v261, %v263
      %v269 = vsel %vm253, %v265, 0.0
      %v270 = vsel %vm254, %v266, 0.0
      %271 = vst [vmem:[#allocation3 + $0x10] sm:$0xf] %v269
      %272 = vst [vmem:[#allocation3 + $0x18] sm:$0xf] %v270
      %v273 = vld [vmem:[#allocation2] sm:$0xff]
      %v274 = vld [vmem:[#allocation2 + $0x8] sm:$0xf]
      %v277 = vcombine.high %v273, %v273
      %278 = vrot.lane.b32.xlu0 %v273, 1
      %v279 = vpop.permute.xlu0 %278
      %280 = vrot.lane.b32.xlu0 %v277, 1
      %v281 = vpop.permute.xlu0 %280
      %282 = vrot.lane.b32.xlu0 %v274, 1
      %v283 = vpop.permute.xlu0 %282
      %vm284 = vcmask 7168
      %v285 = vsel %vm284, %v279, %v281
      %v286 = vsel %vm284, %v281, %v283
      %v289 = vsel %vm210, %v285, 0.0
      %v290 = vsel %vm211, %v286, 0.0
      %v293 = vrot.slane %v289, 4
      %v294 = vrot.slane %v290, 4
      %297 = vst [vmem:[#allocation3 + $0x10] sm:$0xf0] %v293
      %298 = vst [vmem:[#allocation3 + $0x18] sm:$0xf0] %v294
      %v299 = vld [vmem:[#allocation2 + $0x4] sm:$0xff]
      %v301 = vcombine.high %v299, %v299
      %303 = vst [vmem:[#allocation3 + $0x20] sm:$0xf] %v299
      %304 = vst [vmem:[#allocation3 + $0x28] sm:$0xf] %v301
      %v305 = vld [vmem:[#allocation2 + $0x4] sm:$0xff]
      %v306 = vld [vmem:[#allocation2 + $0xc] sm:$0xf]
      %v309 = vcombine.high %v305, %v305
      %310 = vrot.lane.b32.xlu0 %v305, 127
      %v311 = vpop.permute.xlu0 %310
      %312 = vrot.lane.b32.xlu0 %v309, 127
      %v313 = vpop.permute.xlu0 %312
      %314 = vrot.lane.b32.xlu0 %v306, 127
      %v315 = vpop.permute.xlu0 %314
      %vm316 = vcmask 1039360
      %v317 = vsel %vm316, %v311, %v313
      %v318 = vsel %vm316, %v313, %v315
      %v321 = vsel %vm253, %v317, 0.0
      %v322 = vsel %vm254, %v318, 0.0
      %v325 = vrot.slane %v321, 4
      %v326 = vrot.slane %v322, 4
      %329 = vst [vmem:[#allocation3 + $0x20] sm:$0xf0] %v325
      %330 = vst [vmem:[#allocation3 + $0x28] sm:$0xf0] %v326
      %v331 = vld [vmem:[#allocation2 + $0x4] sm:$0xff]
      %v332 = vld [vmem:[#allocation2 + $0xc] sm:$0xf]
      %v335 = vcombine.high %v331, %v331
      %336 = vrot.lane.b32.xlu0 %v331, 113
      %v337 = vpop.permute.xlu0 %336
      %338 = vrot.lane.b32.xlu0 %v335, 113
      %v339 = vpop.permute.xlu0 %338
      %340 = vrot.lane.b32.xlu0 %v332, 113
      %v341 = vpop.permute.xlu0 %340
      %vm342 = vcmask 924672
      %v343 = vsel %vm342, %v337, %v339
      %v344 = vsel %vm342, %v339, %v341
      %v347 = vsel %vm210, %v343, 0.0
      %v348 = vsel %vm211, %v344, 0.0
      %349 = vst [vmem:[#allocation3 + $0x30] sm:$0xf] %v347
      %350 = vst [vmem:[#allocation3 + $0x38] sm:$0xf] %v348
      %v351 = vld [vmem:[#allocation2 + $0x4] sm:$0xff]
      %v352 = vld [vmem:[#allocation2 + $0xc] sm:$0xf]
      %v355 = vcombine.low %v351, %v351
      %v356 = vcombine.low %v352, %v352
      %357 = vrot.lane.b32.xlu0 %v355, 112
      %v358 = vpop.permute.xlu0 %357
      %359 = vrot.lane.b32.xlu0 %v351, 112
      %v360 = vpop.permute.xlu0 %359
      %361 = vrot.lane.b32.xlu0 %v356, 112
      %v362 = vpop.permute.xlu0 %361
      %vm363 = vcmask 916480
      %v364 = vsel %vm363, %v358, %v360
      %v365 = vsel %vm363, %v360, %v362
      %368 = vst [vmem:[#allocation3 + $0x30] sm:$0xf0] %v364
      %369 = vst [vmem:[#allocation3 + $0x38] sm:$0xf0] %v365
      %v370 = vld [vmem:[#allocation2 + $0x4] sm:$0xff]
      %v371 = vld [vmem:[#allocation2 + $0xc] sm:$0xf]
      %v374 = vcombine.high %v370, %v370
      %375 = vrot.lane.b32.xlu0 %v370, 111
      %v376 = vpop.permute.xlu0 %375
      %377 = vrot.lane.b32.xlu0 %v374, 111
      %v378 = vpop.permute.xlu0 %377
      %379 = vrot.lane.b32.xlu0 %v371, 111
      %v380 = vpop.permute.xlu0 %379
      %vm381 = vcmask 908288
      %v382 = vsel %vm381, %v376, %v378
      %v383 = vsel %vm381, %v378, %v380
      %v386 = vsel %vm253, %v382, 0.0
      %v387 = vsel %vm254, %v383, 0.0
      %388 = vst [vmem:[#allocation3 + $0x40] sm:$0xf] %v386
      %389 = vst [vmem:[#allocation3 + $0x48] sm:$0xf] %v387
      %v390 = vld [vmem:[%s1] sm:$0x3f]
      %v391 = vld [vmem:[#allocation3] sm:$0xff]
      %v392 = vld [vmem:[#allocation3 + $0x8] sm:$0xff]
      %v393 = vld [vmem:[#allocation3 + $0x10] sm:$0xff]
      %v394 = vld [vmem:[#allocation3 + $0x18] sm:$0xff]
      %v395 = vld [vmem:[#allocation3 + $0x20] sm:$0xff]
      %v396 = vld [vmem:[#allocation3 + $0x28] sm:$0xff]
      %v397 = vld [vmem:[#allocation3 + $0x30] sm:$0xff]
      %v398 = vld [vmem:[#allocation3 + $0x38] sm:$0xff]
      %v399 = vld [vmem:[#allocation3 + $0x40] sm:$0xf]
      %v400 = vld [vmem:[#allocation3 + $0x48] sm:$0xf]
      %v401 = vld [vmem:[%s2] sm:$0x3f]
      %403 = vset.pattern.permute.xlu0 0
      %404 = vperm.xlu0 %403, %v401
      %v405 = vpop.permute.xlu0 %404
      %vm407 = vcmask 293888
      %v409 = vsel %vm407, %v390, 0
      %vm411 = vcmask 1043456
      %v413 = vsel %vm411, %v399, 0
      %v416 = vsel %vm411, %v400, 0
      %418 = vmatprep.subr.mxu0 0.0
      %419 = vmatpush1.msra.mxu0 0.0
      %420 = vmatprep.subr.mxu0 0.0
      %421 = vmatpush1.msra.mxu0 0.0
      %422 = vmatprep.subr.mxu0 0.0
      %423 = vmatpush1.msra.mxu0 0.0
      %424 = vmatprep.subr.mxu0 0.0
      %425 = vmatpush1.msra.mxu0 0.0
      %426 = vmatprep.subr.mxu0 0.0
      %427 = vmatpush1.msra.mxu0 0.0
      %428 = vmatprep.subr.mxu0 0.0
      %429 = vmatpush1.msra.mxu0 0.0
      %430 = vmatprep.subr.mxu0 0.0
      %431 = vmatpush1.msra.mxu0 0.0
      %432 = vmatprep.subr.mxu0 0.0
      %433 = vmatpush1.msra.mxu0 0.0
      %434 = vmatprep.subr.mxu0 0.0
      %435 = vmatpush1.msra.mxu0 0.0
      %436 = vmatprep.subr.mxu0 0.0
      %437 = vmatpush1.msra.mxu0 0.0
      %438 = vmatprep.subr.mxu0 0.0
      %439 = vmatpush1.msra.mxu0 0.0
      %440 = vmatprep.subr.mxu0 %v416
      %441 = vmatpush1.msra.mxu0 %v413
      %442 = vmatprep.subr.mxu0 %v398
      %443 = vmatpush1.msra.mxu0 %v397
      %444 = vmatprep.subr.mxu0 %v396
      %445 = vmatpush1.msra.mxu0 %v395
      %446 = vmatprep.subr.mxu0 %v394
      %447 = vmatpush1.msra.mxu0 %v393
      %448 = vmatprep.subr.mxu0 %v392
      %449 = vmatpush1.msra.mxu0 %v391
      %450 = vmatprep.subr.mxu0 0.0
      %451 = vmatpush2.msra.mxu0 0.0
      %452 = vmatprep.subr.mxu0 0.0
      %453 = vmatpush2.msra.mxu0 0.0
      %454 = vmatprep.subr.mxu0 0.0
      %455 = vmatpush2.msra.mxu0 0.0
      %456 = vmatprep.subr.mxu0 0.0
      %457 = vmatpush2.msra.mxu0 0.0
      %458 = vmatprep.subr.mxu0 0.0
      %459 = vmatpush2.msra.mxu0 0.0
      %460 = vmatprep.subr.mxu0 0.0
      %461 = vmatpush2.msra.mxu0 0.0
      %462 = vmatprep.subr.mxu0 0.0
      %463 = vmatpush2.msra.mxu0 0.0
      %464 = vmatprep.subr.mxu0 0.0
      %465 = vmatpush2.msra.mxu0 0.0
      %466 = vmatprep.subr.mxu0 0.0
      %467 = vmatpush2.msra.mxu0 0.0
      %468 = vmatprep.subr.mxu0 0.0
      %469 = vmatpush2.msra.mxu0 0.0
      %470 = vmatprep.subr.mxu0 0.0
      %471 = vmatpush2.msra.mxu0 0.0
      %472 = vmatprep.subr.mxu0 0.0
      %473 = vmatpush2.msra.mxu0 0.0
      %474 = vmatprep.subr.mxu0 0.0
      %475 = vmatpush2.msra.mxu0 0.0
      %476 = vmatprep.subr.mxu0 0.0
      %477 = vmatpush2.msra.mxu0 0.0
      %478 = vmatprep.subr.mxu0 0.0
      %479 = vmatpush2.msra.mxu0 0.0
      %480 = vmatprep.subr.mxu0 0.0
      %481 = vmatpush2.msra.mxu0 0.0
      %482 = vmatprep.mubr.f32.mxu0 0.0
      %483 = vmatmul.mubr.f32.gmra.mxu0 %v409
      %v484 = vpop.f32.mrf.mxu0
      %v485 = vadd.f32 %v405, %v484
      %v486 = vpop.f32.mrf.mxu0
      %v487 = vadd.f32 %v405, %v486
      %488 = vdwg.mxu0
      %v489 = vmax.f32 %v485, 0.0
      %v490 = vmax.f32 %v487, 0.0
      %491 = vst [vmem:[%s170] sm:$0x3f] %v489
      %492 = vst [vmem:[%s170 + $0x8] sm:$0x3f] %v490
      %p493 = scmp.lt.s32.totalorder %s14, 1
      %s494 = scalar_select %p493, %s14, 1
      %s495 = smul.addr %s494, 2
      %s496 = smul.addr %s495, 8
      %s497 = scalar_lea.vmem %s3, %s496
      // Predicated region
      $region33: #{simple_conv_forward.1} parent=31 // pred_check
        %p498 = pneg %p100
      $region34: #{simple_conv_forward.1} parent=31 // pred_check_branch
        %500 = sbr.rel (%p498) target = $region36
      $region35: #{simple_conv_forward.1} parent=31 // pred_region
        _
      $region36: #{simple_conv_forward.1} parent=31 // pred_fallthru
        _
    $region32: #{simple_conv_forward.1} parent=5 // pred_fallthru
      _
    %p501 = scmp.le.s32.totalorder 2, %s9
    // Predicated region
    $region37: #{simple_conv_forward.1} parent=5 // pred_check
      %p502 = pneg %p501
    $region38: #{simple_conv_forward.1} parent=5 // pred_check_branch
      %504 = sbr.rel (%p502) target = $region40
    $region39: #{simple_conv_forward.1} parent=5 // pred_region
      %s505 = ssub.s32 %s9, 2
      // Predicated region
      $region41: #{simple_conv_forward.1} parent=39 // pred_check
        %p506 = pneg %p106
      $region42: #{simple_conv_forward.1} parent=39 // pred_check_branch
        %508 = sbr.rel (%p506) target = $region44
      $region43: #{simple_conv_forward.1} parent=39 // pred_region
        %p509 = scmp.lt.s32.totalorder %s15, 1
        %s510 = scalar_select %p509, %s15, 1
        %s511 = smul.addr %s510, 2
        %s512 = smul.addr %s511, 8
        %s513 = scalar_lea.vmem %s3, %s512
      $region44: #{simple_conv_forward.1} parent=39 // pred_fallthru
        _
    $region40: #{simple_conv_forward.1} parent=5 // pred_fallthru
      _
  $region6: #{simple_conv_forward.1} parent=0 // loop_footer
    %s13 = sadd.s32 1, %s9
  $region7: #{simple_conv_forward.1} parent=0 // loop_footer_branch
    %8 = sbr.rel target = $region3
  $region8: #{simple_conv_forward.1} parent=0 // loop_exit
    _

</llo_original>
